<compile_context>
chip_gen: v5e
topology: v5e:2x2
jax: 0.10.0
libtpu: 0.0.40
codegen_flags: <defaults>
</compile_context>

<pallas_src>
import functools

import jax
import jax.numpy as jnp
from jax import lax
from jax.experimental import pallas as pl
from jax.experimental.pallas import tpu as pltpu


def ffn_kernel(x_ref, w1_ref, b1_ref, w2_ref, b2_ref, g_ref, beta_ref, o_ref):
    # x tile in its native dtype -> MXU (bf16 stays bf16, f32 stays f32).
    x = x_ref[...]

    # ---- w_1: Linear(d_in -> d_hid), f32 accumulate, + bias, ReLU ----
    h = jnp.dot(x, w1_ref[...], preferred_element_type=jnp.float32)
    h = jnp.maximum(h + b1_ref[...].astype(jnp.float32), 0.0)

    # ---- w_2: Linear(d_hid -> d_in); feed the MXU in the weight's dtype ----
    h = h.astype(w2_ref.dtype)
    y = jnp.dot(h, w2_ref[...], preferred_element_type=jnp.float32)
    y = y + b2_ref[...].astype(jnp.float32)

    # ---- dropout (eval: identity) + residual, in f32 ----
    y = y + x.astype(jnp.float32)

    # ---- LayerNorm over the last dim, eps=1e-6, biased variance (PyTorch) ----
    mean = jnp.mean(y, axis=-1, keepdims=True)
    diff = y - mean
    var = jnp.mean(diff * diff, axis=-1, keepdims=True)
    y_norm = diff * lax.rsqrt(var + 1e-6)
    out = y_norm * g_ref[...].astype(jnp.float32) + beta_ref[...].astype(jnp.float32)

    # ---- masked_fill(isnan, 0.0) ----
    out = jnp.where(jnp.isnan(out), 0.0, out)

    o_ref[...] = out.astype(o_ref.dtype)


def _round_up(n, m):
    return ((n + m - 1) // m) * m


def _choose_tm(tm_req, M, d_in, d_hid, x_itemsize, w_itemsize, budget_bytes):
    """Row tile: sublane-aligned, no bigger than needed, fits the VMEM budget."""
    row_align = 16 if x_itemsize == 2 else 8  # bf16 packs (16,128) per vreg
    tm = max(row_align, min(tm_req, _round_up(max(M, 1), row_align)))
    tm = _round_up(tm, row_align)

    def footprint(t):
        # resident weights/params + double-buffered x/out tiles + f32 intermediates
        weights = (d_in * d_hid + d_hid * d_in + d_hid + 3 * d_in) * w_itemsize
        act_io = 2 * (t * d_in) * x_itemsize + 2 * (t * d_in) * x_itemsize
        interm = t * d_hid * 4 + 2 * t * d_in * 4
        return weights + act_io + interm

    while tm > row_align and footprint(tm) > budget_bytes:
        tm = max(row_align, _round_up(tm // 2, row_align))
    return tm, footprint(tm)


@functools.partial(jax.jit, static_argnames=("tm",))
def positionwise_feed_forward(x, w1, b1, w2, b2, gamma, beta, *, tm=256):
    """x: (B, S, d_in). w1: (d_in, d_hid), w2: (d_hid, d_in) (already transposed)."""
    B, S, d_in = x.shape
    d_hid = w1.shape[1]
    M = B * S

    budget = 48 * 1024 * 1024  # headroom under v7x's 64 MiB physical VMEM
    tm_eff, footprint = _choose_tm(
        tm, M, d_in, d_hid,
        jnp.dtype(x.dtype).itemsize, jnp.dtype(w1.dtype).itemsize, budget,
    )

    # Pad M up to a multiple of the tile; padded rows are computed then dropped.
    M_pad = _round_up(M, tm_eff)
    x2d = x.reshape(M, d_in)
    if M_pad != M:
        x2d = jnp.pad(x2d, ((0, M_pad - M), (0, 0)))

    b1_2d = b1.reshape(1, d_hid)
    b2_2d = b2.reshape(1, d_in)
    g_2d = gamma.reshape(1, d_in)
    beta_2d = beta.reshape(1, d_in)

    vmem_limit = int(min(max(footprint * 2, 32 * 1024 * 1024), 64 * 1024 * 1024))

    out2d = pl.pallas_call(
        ffn_kernel,
        out_shape=jax.ShapeDtypeStruct((M_pad, d_in), x.dtype),
        grid_spec=pltpu.PrefetchScalarGridSpec(
            num_scalar_prefetch=0,
            grid=(M_pad // tm_eff,),
            in_specs=[
                pl.BlockSpec((tm_eff, d_in), lambda i: (i, 0)),   # x tile
                pl.BlockSpec((d_in, d_hid), lambda i: (0, 0)),    # W1 (resident)
                pl.BlockSpec((1, d_hid), lambda i: (0, 0)),       # b1
                pl.BlockSpec((d_hid, d_in), lambda i: (0, 0)),    # W2 (resident)
                pl.BlockSpec((1, d_in), lambda i: (0, 0)),        # b2
                pl.BlockSpec((1, d_in), lambda i: (0, 0)),        # LN gamma
                pl.BlockSpec((1, d_in), lambda i: (0, 0)),        # LN beta
            ],
            out_specs=pl.BlockSpec((tm_eff, d_in), lambda i: (i, 0)),
        ),
        compiler_params=pltpu.CompilerParams(
            dimension_semantics=("parallel",),   # row-tile axis shards across TCs
            vmem_limit_bytes=vmem_limit,
        ),
    )(x2d, w1, b1_2d, w2, b2_2d, g_2d, beta_2d)

    return out2d[:M].reshape(B, S, d_in)


def reference_ffn(x, w1, b1, w2, b2, gamma, beta):
    """Pure-JAX reference mirroring the PyTorch forward (eval mode)."""
    residual = x
    h = jnp.maximum(x @ w1 + b1, 0.0)
    y = h @ w2 + b2
    y = y + residual
    mean = jnp.mean(y, axis=-1, keepdims=True)
    var = jnp.mean((y - mean) ** 2, axis=-1, keepdims=True)
    y = (y - mean) / jnp.sqrt(var + 1e-6)
    y = y * gamma + beta
    return jnp.where(jnp.isnan(y), 0.0, y)


if __name__ == "__main__":
    # Small shapes consistent with the module: batch=2, seq=8, d_in=32, d_hid=64.
    # (Production d_in should be a multiple of 128 for lane-dense stores.)
    B, S, d_in, d_hid = 2, 8, 32, 64

    key = jax.random.PRNGKey(0)
    kx, kw1, kb1, kw2, kb2 = jax.random.split(key, 5)

    x = jax.random.normal(kx, (B, S, d_in), dtype=jnp.float32)

    # Weights stored transposed relative to PyTorch's (out, in) convention.
    w1 = jax.random.normal(kw1, (d_in, d_hid), dtype=jnp.float32) * 0.1
    b1 = jax.random.normal(kb1, (d_hid,), dtype=jnp.float32) * 0.1
    w2 = jax.random.normal(kw2, (d_hid, d_in), dtype=jnp.float32) * 0.1
    b2 = jax.random.normal(kb2, (d_in,), dtype=jnp.float32) * 0.1
    gamma = jnp.ones((d_in,), dtype=jnp.float32)   # LayerNorm weight init
    beta = jnp.zeros((d_in,), dtype=jnp.float32)   # LayerNorm bias init

    out = positionwise_feed_forward(x, w1, b1, w2, b2, gamma, beta)
    out = jax.block_until_ready(out)

    ref = reference_ffn(x, w1, b1, w2, b2, gamma, beta)
    assert out.shape == (B, S, d_in)
    assert jnp.allclose(out, ref, atol=1e-4, rtol=1e-4), "mismatch vs reference"

    print("KERNEL_OK")
</pallas_src>

<mosaic_0001>
module attributes {stable_mosaic.version = 11 : i64} {
  func.func @ffn_kernel(%arg0: i32, %arg1: memref<16x32xf32, #tpu.memory_space<vmem>>, %arg2: memref<32x64xf32, #tpu.memory_space<vmem>>, %arg3: memref<1x64xf32, #tpu.memory_space<vmem>>, %arg4: memref<64x32xf32, #tpu.memory_space<vmem>>, %arg5: memref<1x32xf32, #tpu.memory_space<vmem>>, %arg6: memref<1x32xf32, #tpu.memory_space<vmem>>, %arg7: memref<1x32xf32, #tpu.memory_space<vmem>>, %arg8: memref<16x32xf32, #tpu.memory_space<vmem>>) attributes {dimension_semantics = [#tpu.dimension_semantics<parallel>], iteration_bounds = array<i64: 1>, scalar_prefetch = 0 : i64, scratch_operands = 0 : i64, tpu.core_type = #tpu.core_type<tc>, window_params = [{transform_indices = @transform_0, window_bounds = array<i64: 16, 32>}, {pipeline_mode = #tpu.pipeline_mode<synchronous>, transform_indices = @transform_1, window_bounds = array<i64: 32, 64>}, {pipeline_mode = #tpu.pipeline_mode<synchronous>, transform_indices = @transform_2, window_bounds = array<i64: 1, 64>}, {pipeline_mode = #tpu.pipeline_mode<synchronous>, transform_indices = @transform_3, window_bounds = array<i64: 64, 32>}, {pipeline_mode = #tpu.pipeline_mode<synchronous>, transform_indices = @transform_4, window_bounds = array<i64: 1, 32>}, {pipeline_mode = #tpu.pipeline_mode<synchronous>, transform_indices = @transform_5, window_bounds = array<i64: 1, 32>}, {pipeline_mode = #tpu.pipeline_mode<synchronous>, transform_indices = @transform_6, window_bounds = array<i64: 1, 32>}, {transform_indices = @transform_7, window_bounds = array<i64: 16, 32>}]} {
    %c0 = arith.constant 0 : index
    %c0_0 = arith.constant 0 : index
    %0 = vector.load %arg1[%c0, %c0_0] : memref<16x32xf32, #tpu.memory_space<vmem>>, vector<16x32xf32>
    %c0_1 = arith.constant 0 : index
    %c0_2 = arith.constant 0 : index
    %1 = vector.load %arg2[%c0_1, %c0_2] : memref<32x64xf32, #tpu.memory_space<vmem>>, vector<32x64xf32>
    %cst = arith.constant dense<0.000000e+00> : vector<16x64xf32>
    %2 = tpu.matmul %0, %1, %cst {dimension_numbers = #tpu.dot_dimension_numbers<[1], [0], [0], [1], [0, 0, 1, 1], [], []>} : vector<16x32xf32>, vector<32x64xf32>, vector<16x64xf32> -> vector<16x64xf32>
    %c0_3 = arith.constant 0 : index
    %c0_4 = arith.constant 0 : index
    %3 = vector.load %arg3[%c0_3, %c0_4] : memref<1x64xf32, #tpu.memory_space<vmem>>, vector<1x64xf32>
    %4 = vector.broadcast %3 : vector<1x64xf32> to vector<16x64xf32>
    %5 = arith.addf %2, %4 : vector<16x64xf32>
    %cst_5 = arith.constant 0.000000e+00 : f32
    %6 = vector.broadcast %cst_5 : f32 to vector<16x64xf32>
    %7 = arith.maximumf %5, %6 : vector<16x64xf32>
    %c0_6 = arith.constant 0 : index
    %c0_7 = arith.constant 0 : index
    %8 = vector.load %arg4[%c0_6, %c0_7] : memref<64x32xf32, #tpu.memory_space<vmem>>, vector<64x32xf32>
    %cst_8 = arith.constant dense<0.000000e+00> : vector<16x32xf32>
    %9 = tpu.matmul %7, %8, %cst_8 {dimension_numbers = #tpu.dot_dimension_numbers<[1], [0], [0], [1], [0, 0, 1, 1], [], []>} : vector<16x64xf32>, vector<64x32xf32>, vector<16x32xf32> -> vector<16x32xf32>
    %c0_9 = arith.constant 0 : index
    %c0_10 = arith.constant 0 : index
    %10 = vector.load %arg5[%c0_9, %c0_10] : memref<1x32xf32, #tpu.memory_space<vmem>>, vector<1x32xf32>
    %11 = vector.broadcast %10 : vector<1x32xf32> to vector<16x32xf32>
    %12 = arith.addf %9, %11 : vector<16x32xf32>
    %13 = arith.addf %12, %0 : vector<16x32xf32>
    %cst_11 = arith.constant dense<0.000000e+00> : vector<16xf32>
    %14 = vector.multi_reduction <add>, %13, %cst_11 [1] : vector<16x32xf32> to vector<16xf32>
    %15 = vector.shape_cast %14 : vector<16xf32> to vector<16x1xf32>
    %cst_12 = arith.constant 3.200000e+01 : f32
    %16 = vector.broadcast %cst_12 : f32 to vector<16x1xf32>
    %17 = arith.divf %15, %16 : vector<16x1xf32>
    %18 = vector.broadcast %17 : vector<16x1xf32> to vector<16x32xf32>
    %19 = arith.subf %13, %18 : vector<16x32xf32>
    %20 = arith.mulf %19, %19 : vector<16x32xf32>
    %cst_13 = arith.constant dense<0.000000e+00> : vector<16xf32>
    %21 = vector.multi_reduction <add>, %20, %cst_13 [1] : vector<16x32xf32> to vector<16xf32>
    %22 = vector.shape_cast %21 : vector<16xf32> to vector<16x1xf32>
    %cst_14 = arith.constant 3.200000e+01 : f32
    %23 = vector.broadcast %cst_14 : f32 to vector<16x1xf32>
    %24 = arith.divf %22, %23 : vector<16x1xf32>
    %cst_15 = arith.constant 9.99999997E-7 : f32
    %25 = vector.broadcast %cst_15 : f32 to vector<16x1xf32>
    %26 = arith.addf %24, %25 : vector<16x1xf32>
    %27 = math.rsqrt %26 : vector<16x1xf32>
    %28 = vector.broadcast %27 : vector<16x1xf32> to vector<16x32xf32>
    %29 = arith.mulf %19, %28 : vector<16x32xf32>
    %c0_16 = arith.constant 0 : index
    %c0_17 = arith.constant 0 : index
    %30 = vector.load %arg6[%c0_16, %c0_17] : memref<1x32xf32, #tpu.memory_space<vmem>>, vector<1x32xf32>
    %31 = vector.broadcast %30 : vector<1x32xf32> to vector<16x32xf32>
    %32 = arith.mulf %29, %31 : vector<16x32xf32>
    %c0_18 = arith.constant 0 : index
    %c0_19 = arith.constant 0 : index
    %33 = vector.load %arg7[%c0_18, %c0_19] : memref<1x32xf32, #tpu.memory_space<vmem>>, vector<1x32xf32>
    %34 = vector.broadcast %33 : vector<1x32xf32> to vector<16x32xf32>
    %35 = arith.addf %32, %34 : vector<16x32xf32>
    %36 = arith.cmpf one, %35, %35 : vector<16x32xf32>
    %cst_20 = arith.constant 0.000000e+00 : f32
    %37 = vector.broadcast %cst_20 : f32 to vector<16x32xf32>
    %38 = arith.select %36, %37, %35 : vector<16x32xi1>, vector<16x32xf32>
    %c0_21 = arith.constant 0 : index
    %c0_22 = arith.constant 0 : index
    %39 = vector.load %arg8[%c0_21, %c0_22] : memref<16x32xf32, #tpu.memory_space<vmem>>, vector<16x32xf32>
    tpu.vector_store %arg8[%c0_21, %c0_22], %38 {strides = array<i32>} : memref<16x32xf32, #tpu.memory_space<vmem>>, vector<16x32xf32>,
    return
  }
  func.func @transform_0(%arg0: i32) -> (i32, i32) {
    %c0_i32 = arith.constant 0 : i32
    %c0_i32_0 = arith.constant 0 : i32
    return %arg0, %c0_i32 : i32, i32
  }
  func.func @transform_1(%arg0: i32) -> (i32, i32) {
    %c0_i32 = arith.constant 0 : i32
    %c0_i32_0 = arith.constant 0 : i32
    %c0_i32_1 = arith.constant 0 : i32
    return %c0_i32, %c0_i32_0 : i32, i32
  }
  func.func @transform_2(%arg0: i32) -> (i32, i32) {
    %c0_i32 = arith.constant 0 : i32
    %c0_i32_0 = arith.constant 0 : i32
    %c0_i32_1 = arith.constant 0 : i32
    return %c0_i32, %c0_i32_0 : i32, i32
  }
  func.func @transform_3(%arg0: i32) -> (i32, i32) {
    %c0_i32 = arith.constant 0 : i32
    %c0_i32_0 = arith.constant 0 : i32
    %c0_i32_1 = arith.constant 0 : i32
    return %c0_i32, %c0_i32_0 : i32, i32
  }
  func.func @transform_4(%arg0: i32) -> (i32, i32) {
    %c0_i32 = arith.constant 0 : i32
    %c0_i32_0 = arith.constant 0 : i32
    %c0_i32_1 = arith.constant 0 : i32
    return %c0_i32, %c0_i32_0 : i32, i32
  }
  func.func @transform_5(%arg0: i32) -> (i32, i32) {
    %c0_i32 = arith.constant 0 : i32
    %c0_i32_0 = arith.constant 0 : i32
    %c0_i32_1 = arith.constant 0 : i32
    return %c0_i32, %c0_i32_0 : i32, i32
  }
  func.func @transform_6(%arg0: i32) -> (i32, i32) {
    %c0_i32 = arith.constant 0 : i32
    %c0_i32_0 = arith.constant 0 : i32
    %c0_i32_1 = arith.constant 0 : i32
    return %c0_i32, %c0_i32_0 : i32, i32
  }
  func.func @transform_7(%arg0: i32) -> (i32, i32) {
    %c0_i32 = arith.constant 0 : i32
    %c0_i32_0 = arith.constant 0 : i32
    return %arg0, %c0_i32 : i32, i32
  }
}

</mosaic_0001>

<llo_original>
// kernel: positionwise_feed_forward.1
$region0: #{positionwise_feed_forward.1}
  #allocation0 [shape = 'u32[]', space=smem, size = 0x4, offset = 0x4, fixed_abs, tag = 'smem constant byte address 0x4 - core index']
  #allocation1 [shape = 'u32[72,128]{1,0:T(1,128)}', space=vmem, size = 0x9000, scoped, tag = 'internal scratch']
  %s0 = inlined_call_operand.vmem [shape: f32[16,32], index: 0, kind: input, shape index: {}]
  %s1 = inlined_call_operand.vmem [shape: f32[32,64], index: 1, kind: input, shape index: {}]
  %s2 = inlined_call_operand.vmem [shape: f32[1,64], index: 2, kind: input, shape index: {}]
  %s3 = inlined_call_operand.vmem [shape: f32[64,32], index: 3, kind: input, shape index: {}]
  %s4 = inlined_call_operand.vmem [shape: f32[1,32], index: 4, kind: input, shape index: {}]
  %s5 = inlined_call_operand.vmem [shape: f32[1,32], index: 5, kind: input, shape index: {}]
  %s6 = inlined_call_operand.vmem [shape: f32[1,32], index: 6, kind: input, shape index: {}]
  %s7 = inlined_call_operand.hbm [shape: f32[16,32], index: 7, kind: output, shape index: {}]
  %s8 = sld [smem:[#allocation0]]
  $region38: #{positionwise_feed_forward.1} parent=0
    _
  %s10 = ssub.s32 1, %s8
  %s11 = scalar_select 0, %s10, %s8
  $region1: #{positionwise_feed_forward.1} parent=0
    #allocation2 [shape = 'u8[8192]{0}', space=vmem, size = 0x2000, scoped, tag = 'output window, operand 0, single buffered']
    #allocation3 [shape = 's32[1]{0}', space=sflag, size = 0x4, scoped, tag = 'scoped memory for positionwise_feed_forward.1']
    %12 = vsyncpa [#allocation3], 0
    // Predicated region
    $region2: #{positionwise_feed_forward.1} parent=1 // pred_check
      _
    $region3: #{positionwise_feed_forward.1} parent=1 // pred_check_branch
      %14 = sbr.rel (0) target = $region5
    $region4: #{positionwise_feed_forward.1} parent=1 // pred_region
      _
    $region5: #{positionwise_feed_forward.1} parent=1 // pred_fallthru
      _
    // Predicated region
    $region6: #{positionwise_feed_forward.1} parent=1 // pred_check
      _
    $region7: #{positionwise_feed_forward.1} parent=1 // pred_check_branch
      %16 = sbr.rel (0) target = $region9
    $region8: #{positionwise_feed_forward.1} parent=1 // pred_region
      _
    $region9: #{positionwise_feed_forward.1} parent=1 // pred_fallthru
      _
    // Predicated region
    $region10: #{positionwise_feed_forward.1} parent=1 // pred_check
      _
    $region11: #{positionwise_feed_forward.1} parent=1 // pred_check_branch
      %18 = sbr.rel (0) target = $region13
    $region12: #{positionwise_feed_forward.1} parent=1 // pred_region
      _
    $region13: #{positionwise_feed_forward.1} parent=1 // pred_fallthru
      _
    // Predicated region
    $region14: #{positionwise_feed_forward.1} parent=1 // pred_check
      _
    $region15: #{positionwise_feed_forward.1} parent=1 // pred_check_branch
      %20 = sbr.rel (0) target = $region17
    $region16: #{positionwise_feed_forward.1} parent=1 // pred_region
      _
    $region17: #{positionwise_feed_forward.1} parent=1 // pred_fallthru
      _
    // Predicated region
    $region18: #{positionwise_feed_forward.1} parent=1 // pred_check
      _
    $region19: #{positionwise_feed_forward.1} parent=1 // pred_check_branch
      %22 = sbr.rel (0) target = $region21
    $region20: #{positionwise_feed_forward.1} parent=1 // pred_region
      _
    $region21: #{positionwise_feed_forward.1} parent=1 // pred_fallthru
      _
    // Predicated region
    $region22: #{positionwise_feed_forward.1} parent=1 // pred_check
      _
    $region23: #{positionwise_feed_forward.1} parent=1 // pred_check_branch
      %24 = sbr.rel (0) target = $region25
    $region24: #{positionwise_feed_forward.1} parent=1 // pred_region
      _
    $region25: #{positionwise_feed_forward.1} parent=1 // pred_fallthru
      _
    // Predicated region
    $region26: #{positionwise_feed_forward.1} parent=1 // pred_check
      _
    $region27: #{positionwise_feed_forward.1} parent=1 // pred_check_branch
      %26 = sbr.rel (0) target = $region29
    $region28: #{positionwise_feed_forward.1} parent=1 // pred_region
      _
    $region29: #{positionwise_feed_forward.1} parent=1 // pred_fallthru
      _
    %v27 = vld [vmem:[%s0] sm:$0xff]
    %v28 = vld [vmem:[%s0 + $0x8] sm:$0xff]
    %v29 = vld [vmem:[%s1] sm:$0xff]
    %v30 = vld [vmem:[%s1 + $0x8] sm:$0xff]
    %v31 = vld [vmem:[%s1 + $0x10] sm:$0xff]
    %v32 = vld [vmem:[%s1 + $0x18] sm:$0xff]
    %v33 = vld [vmem:[%s2] sm:$0x1]
    %v35 = vperm.slane %v33, 0
    %vm37 = vcmask 261120
    %v39 = vsel %vm37, %v27, 0
    %v42 = vsel %vm37, %v28, 0
    %44 = vmatpush.msra.mxu0 0.0
    %45 = vmatpush.msra.mxu0 0.0
    %46 = vmatpush.msra.mxu0 0.0
    %47 = vmatpush.msra.mxu0 0.0
    %48 = vmatpush.msra.mxu0 0.0
    %49 = vmatpush.msra.mxu0 0.0
    %50 = vmatpush.msra.mxu0 0.0
    %51 = vmatpush.msra.mxu0 0.0
    %52 = vmatpush.msra.mxu0 0.0
    %53 = vmatpush.msra.mxu0 0.0
    %54 = vmatpush.msra.mxu0 0.0
    %55 = vmatpush.msra.mxu0 0.0
    %56 = vmatpush.msra.mxu0 %v32
    %57 = vmatpush.msra.mxu0 %v31
    %58 = vmatpush.msra.mxu0 %v30
    %59 = vmatpush.msra.mxu0 %v29
    %60 = vmatmul.f32.gmra.mxu0 %v39
    %v61 = vpop.f32.mrf.mxu0
    %v62 = vadd.f32 %v35, %v61
    %63 = vmatmul.f32.gmra.mxu0 %v42
    %v64 = vpop.f32.mrf.mxu0
    %v65 = vadd.f32 %v35, %v64
    %66 = vdwg.mxu0
    %v67 = vmax.f32 %v62, 0.0
    %v68 = vmax.f32 %v65, 0.0
    %v69 = vld [vmem:[%s3] sm:$0xff]
    %v70 = vld [vmem:[%s3 + $0x8] sm:$0xff]
    %v71 = vld [vmem:[%s3 + $0x10] sm:$0xff]
    %v72 = vld [vmem:[%s3 + $0x18] sm:$0xff]
    %v73 = vld [vmem:[%s3 + $0x20] sm:$0xff]
    %v74 = vld [vmem:[%s3 + $0x28] sm:$0xff]
    %v75 = vld [vmem:[%s3 + $0x30] sm:$0xff]
    %v76 = vld [vmem:[%s3 + $0x38] sm:$0xff]
    %v77 = vld [vmem:[%s4] sm:$0x1]
    %v79 = vperm.slane %v77, 0
    %vm81 = vcmask 523264
    %v83 = vsel %vm81, %v67, 0
    %v86 = vsel %vm81, %v68, 0
    %88 = vmatpush.msra.mxu0 0.0
    %89 = vmatpush.msra.mxu0 0.0
    %90 = vmatpush.msra.mxu0 0.0
    %91 = vmatpush.msra.mxu0 0.0
    %92 = vmatpush.msra.mxu0 0.0
    %93 = vmatpush.msra.mxu0 0.0
    %94 = vmatpush.msra.mxu0 0.0
    %95 = vmatpush.msra.mxu0 0.0
    %96 = vmatpush.msra.mxu0 %v76
    %97 = vmatpush.msra.mxu0 %v75
    %98 = vmatpush.msra.mxu0 %v74
    %99 = vmatpush.msra.mxu0 %v73
    %100 = vmatpush.msra.mxu0 %v72
    %101 = vmatpush.msra.mxu0 %v71
    %102 = vmatpush.msra.mxu0 %v70
    %103 = vmatpush.msra.mxu0 %v69
    %104 = vmatmul.f32.gmra.mxu0 %v83
    %v105 = vpop.f32.mrf.mxu0
    %v106 = vadd.f32 %v79, %v105
    %107 = vmatmul.f32.gmra.mxu0 %v86
    %v108 = vpop.f32.mrf.mxu0
    %v109 = vadd.f32 %v79, %v108
    %110 = vdwg.mxu0
    %v111 = vadd.f32 %v106, %v27
    %v112 = vadd.f32 %v109, %v28
    %v113 = vsel %vm37, %v111, 0.0
    %114 = vadd.xlane.f32.xlu0 %v113
    %v115 = vpop.xlane.xlu0 %114
    %v116 = vsel %vm37, %v112, 0.0
    %117 = vadd.xlane.f32.xlu0 %v116
    %v118 = vpop.xlane.xlu0 %117
    %v119 = vrcp.pop 32.0
    %v120 = vmul.f32 32.0, %v119
    %v121 = vsub.f32 1.0, %v120
    %v122 = vmul.f32 %v119, %v121
    %v123 = vadd.f32 %v119, %v122
    %vm124 = vweird.f32 %v119
    %v125 = vsel %vm124, %v119, %v123
    %v126 = vmul.f32 %v115, %v125
    %v127 = vmul.f32 %v118, %v125
    %v128 = vsub.f32 %v111, %v126
    %v129 = vsub.f32 %v112, %v127
    %v130 = vmul.f32 %v128, %v128
    %v131 = vmul.f32 %v129, %v129
    %v132 = vsel %vm37, %v130, 0.0
    %133 = vadd.xlane.f32.xlu0 %v132
    %v134 = vpop.xlane.xlu0 %133
    %v135 = vsel %vm37, %v131, 0.0
    %136 = vadd.xlane.f32.xlu0 %v135
    %v137 = vpop.xlane.xlu0 %136
    %v138 = vmul.f32 %v134, %v125
    %v139 = vmul.f32 %v137, %v125
    %v140 = vadd.f32 %v138, 1e-06
    %v141 = vadd.f32 %v139, 1e-06
    %v142 = vrsqrt.pop %v140
    %v143 = vmul.f32 %v142, %v140
    %v144 = vmul.f32 %v143, %v142
    %v145 = vmul.f32 0.5, %v144
    %v146 = vsub.f32 1.5, %v145
    %v147 = vmul.f32 %v142, %v146
    %vm148 = vweird.f32 %v140
    %vm149 = vweird.f32 %v142
    %vm150 = vmor %vm148, %vm149
    %v151 = vsel %vm150, %v142, %v147
    %v152 = vrsqrt.pop %v141
    %v153 = vmul.f32 %v152, %v141
    %v154 = vmul.f32 %v153, %v152
    %v155 = vmul.f32 0.5, %v154
    %v156 = vsub.f32 1.5, %v155
    %v157 = vmul.f32 %v152, %v156
    %vm158 = vweird.f32 %v141
    %vm159 = vweird.f32 %v152
    %vm160 = vmor %vm158, %vm159
    %v161 = vsel %vm160, %v152, %v157
    %v162 = vmul.f32 %v128, %v151
    %v163 = vmul.f32 %v129, %v161
    %v164 = vld [vmem:[%s5] sm:$0x1]
    %v166 = vperm.slane %v164, 0
    %v168 = vmul.f32 %v162, %v166
    %v169 = vmul.f32 %v163, %v166
    %v170 = vld [vmem:[%s6] sm:$0x1]
    %v172 = vperm.slane %v170, 0
    %v174 = vadd.f32 %v168, %v172
    %v175 = vadd.f32 %v169, %v172
    %vm176 = vcmp.ne.f32.partialorder %v174, %v174
    %vm177 = vcmp.ne.f32.partialorder %v175, %v175
    %v178 = vsel %vm176, 0.0, %v174
    %v179 = vsel %vm177, 0.0, %v175
    %180 = vst.msk [vmem:[#allocation2] sm:$0xff] %vm37, %v178
    %181 = vst.msk [vmem:[#allocation2 + $0x8] sm:$0xff] %vm37, %v179
    // Predicated region
    $region30: #{positionwise_feed_forward.1} parent=1 // pred_check
      _
    $region31: #{positionwise_feed_forward.1} parent=1 // pred_check_branch
      %183 = sbr.rel (0) target = $region33
    $region32: #{positionwise_feed_forward.1} parent=1 // pred_region
      %185 = vsyncadd [#allocation3], 0
      %s186 = sshll.u32 [#allocation2], 4
      %s187 = int_to_ptr.vmem [resolvable:$true] %s186
      %s188 = sshll.u32 %s7, 4
      %s189 = int_to_ptr.hbm [resolvable:$true] %s188
      %194 = dma.vmem_to_hbm [thread:$0]  %s187, 256, %s189, [#allocation3], 128, 128, 8
    $region33: #{positionwise_feed_forward.1} parent=1 // pred_fallthru
      _
    // Predicated region
    $region34: #{positionwise_feed_forward.1} parent=1 // pred_check
      _
    $region35: #{positionwise_feed_forward.1} parent=1 // pred_check_branch
      %196 = sbr.rel (0) target = $region37
    $region36: #{positionwise_feed_forward.1} parent=1 // pred_region
      %198 = dma.done [#allocation3], 256
    $region37: #{positionwise_feed_forward.1} parent=1 // pred_fallthru
      _
    %199 = vsyncpa [#allocation3], 1

</llo_original>
